<compile_context>
chip_gen: v6e
topology: v6e:2x2x1
jax: 0.10.0
libtpu: 0.0.40
codegen_flags: <defaults>
</compile_context>

<pallas_src>
import jax
import jax.numpy as jnp
from jax import lax
from jax.experimental import pallas as pl
from jax.experimental.pallas import tpu as pltpu


def _filter2d_kernel(x_ref, o_ref, pad_ref):
    # x_ref  : VMEM (3, H, W)       channels 0..2 of one batch element
    # o_ref  : VMEM (3, H, W)       filtered output
    # pad_ref: VMEM (3, H+2, W+2)   zero-padded halo slab (scratch)
    _, H, W = o_ref.shape

    # Zero the slab every step (cheap VMEM traffic; keeps the halo at zero and
    # stays correct even when the parallel grid axis is split across cores),
    # then drop the input into the interior.
    pad_ref[...] = jnp.zeros_like(pad_ref)
    xc = x_ref[...]
    pad_ref[:, 1:H + 1, 1:W + 1] = xc

    # 5-tap stencil with baked constants (zero taps skipped).  The four
    # neighbor taps are ref-sliced loads from the padded slab: sublane-offset
    # loads for up/down, lane-offset loads for left/right.
    up    = pad_ref[:, 0:H,     1:W + 1]
    down  = pad_ref[:, 2:H + 2, 1:W + 1]
    left  = pad_ref[:, 1:H + 1, 0:W]
    right = pad_ref[:, 1:H + 1, 2:W + 2]

    o_ref[...] = (4.9 * xc - (up + down) - (left + right)).astype(o_ref.dtype)


def filter2d(x):
    """x: (N, C>=3, H, W) float32 -> (N, 3, H, W) float32 (PyTorch filter2D)."""
    N, C, H, W = x.shape
    assert C >= 3, "filter2D uses channels 0, 1, 2"

    # Whole-image blocks (channels folded in) -> 1 grid step per batch element.
    # Rough double-buffered working set; for very large images tile H instead
    # (with a 1-row halo) to stay under the scoped-VMEM budget (v7x: 64 MiB).
    blk_bytes = 4 * 3 * ((H + 2) * (W + 2) + 4 * H * W)
    assert blk_bytes < 24 * 1024 * 1024, (
        "image too large for whole-image blocks; add a row-tile grid axis")

    out = pl.pallas_call(
        _filter2d_kernel,
        out_shape=jax.ShapeDtypeStruct((N, 3, H, W), x.dtype),
        grid_spec=pltpu.PrefetchScalarGridSpec(
            num_scalar_prefetch=0,
            grid=(N,),
            in_specs=[
                # Channels 0..2 of batch n, straight from the (N, C, H, W)
                # input: channel block 0 of size 3 covers exactly channels
                # 0..2, so no wrapper-side slice/copy is needed.
                pl.BlockSpec(
                    (pl.Squeezed(), 3, H, W),
                    lambda n: (n, 0, 0, 0),
                ),
            ],
            out_specs=pl.BlockSpec(
                (pl.Squeezed(), 3, H, W),
                lambda n: (n, 0, 0, 0),
            ),
            scratch_shapes=[pltpu.VMEM((3, H + 2, W + 2), jnp.float32)],
        ),
        compiler_params=pltpu.CompilerParams(
            dimension_semantics=("parallel",),
        ),
    )(x)
    return out


def _reference(x):
    """Pure-JAX reference via lax.conv (depthwise, padding=1)."""
    weight = jnp.array([[0.0, -1.0, 0.0],
                        [-1.0, 4.9, -1.0],
                        [0.0, -1.0, 0.0]], dtype=jnp.float32)
    x3 = x[:, :3]
    w = jnp.broadcast_to(weight[None, None], (3, 1, 3, 3))
    return lax.conv_general_dilated(
        x3, w, window_strides=(1, 1), padding=((1, 1), (1, 1)),
        dimension_numbers=("NCHW", "OIHW", "NCHW"), feature_group_count=3)


if __name__ == "__main__":
    key = jax.random.PRNGKey(0)
    x = jax.random.normal(key, (2, 4, 16, 16), dtype=jnp.float32)

    out = filter2d(x)
    jax.block_until_ready(out)

    ref = _reference(x)
    assert out.shape == (2, 3, 16, 16)
    assert jnp.allclose(out, ref, atol=1e-5, rtol=1e-5), "mismatch vs reference conv"

    print("KERNEL_OK")
</pallas_src>

<mosaic_0001>
module attributes {stable_mosaic.version = 11 : i64} {
  func.func @_filter2d_kernel(%arg0: i32, %arg1: memref<1x3x16x16xf32, #tpu.memory_space<vmem>>, %arg2: memref<1x3x16x16xf32, #tpu.memory_space<vmem>>, %arg3: memref<3x18x18xf32, #tpu.memory_space<vmem>>) attributes {dimension_semantics = [#tpu.dimension_semantics<parallel>], iteration_bounds = array<i64: 2>, scalar_prefetch = 0 : i64, scratch_operands = 1 : i64, tpu.core_type = #tpu.core_type<tc>, window_params = [{transform_indices = @transform_0, window_bounds = array<i64: 1, 3, 16, 16>}, {transform_indices = @transform_1, window_bounds = array<i64: 1, 3, 16, 16>}]} {
    %cst = arith.constant 0.000000e+00 : f32
    %0 = vector.broadcast %cst : f32 to vector<3x18x18xf32>
    %c0 = arith.constant 0 : index
    %c0_0 = arith.constant 0 : index
    %c0_1 = arith.constant 0 : index
    %1 = vector.load %arg3[%c0, %c0_0, %c0_1] : memref<3x18x18xf32, #tpu.memory_space<vmem>>, vector<3x18x18xf32>
    tpu.vector_store %arg3[%c0, %c0_0, %c0_1], %0 {strides = array<i32>} : memref<3x18x18xf32, #tpu.memory_space<vmem>>, vector<3x18x18xf32>,
    %c0_2 = arith.constant 0 : index
    %c0_3 = arith.constant 0 : index
    %c0_4 = arith.constant 0 : index
    %c0_5 = arith.constant 0 : index
    %2 = vector.load %arg1[%c0_2, %c0_3, %c0_4, %c0_5] : memref<1x3x16x16xf32, #tpu.memory_space<vmem>>, vector<1x3x16x16xf32>
    %3 = vector.shape_cast %2 : vector<1x3x16x16xf32> to vector<3x16x16xf32>
    %c0_6 = arith.constant 0 : index
    %c1 = arith.constant 1 : index
    %c1_7 = arith.constant 1 : index
    %4 = vector.load %arg3[%c0_6, %c1, %c1_7] : memref<3x18x18xf32, #tpu.memory_space<vmem>>, vector<3x16x16xf32>
    tpu.vector_store %arg3[%c0_6, %c1, %c1_7], %3 {strides = array<i32>} : memref<3x18x18xf32, #tpu.memory_space<vmem>>, vector<3x16x16xf32>,
    %c0_8 = arith.constant 0 : index
    %c0_9 = arith.constant 0 : index
    %c1_10 = arith.constant 1 : index
    %5 = vector.load %arg3[%c0_8, %c0_9, %c1_10] : memref<3x18x18xf32, #tpu.memory_space<vmem>>, vector<3x16x16xf32>
    %c0_11 = arith.constant 0 : index
    %c2 = arith.constant 2 : index
    %c1_12 = arith.constant 1 : index
    %6 = vector.load %arg3[%c0_11, %c2, %c1_12] : memref<3x18x18xf32, #tpu.memory_space<vmem>>, vector<3x16x16xf32>
    %c0_13 = arith.constant 0 : index
    %c1_14 = arith.constant 1 : index
    %c0_15 = arith.constant 0 : index
    %7 = vector.load %arg3[%c0_13, %c1_14, %c0_15] : memref<3x18x18xf32, #tpu.memory_space<vmem>>, vector<3x16x16xf32>
    %c0_16 = arith.constant 0 : index
    %c1_17 = arith.constant 1 : index
    %c2_18 = arith.constant 2 : index
    %8 = vector.load %arg3[%c0_16, %c1_17, %c2_18] : memref<3x18x18xf32, #tpu.memory_space<vmem>>, vector<3x16x16xf32>
    %cst_19 = arith.constant 4.900000e+00 : f32
    %9 = vector.broadcast %cst_19 : f32 to vector<3x16x16xf32>
    %10 = arith.mulf %9, %3 : vector<3x16x16xf32>
    %11 = arith.addf %5, %6 : vector<3x16x16xf32>
    %12 = arith.subf %10, %11 : vector<3x16x16xf32>
    %13 = arith.addf %7, %8 : vector<3x16x16xf32>
    %14 = arith.subf %12, %13 : vector<3x16x16xf32>
    %c0_20 = arith.constant 0 : index
    %c0_21 = arith.constant 0 : index
    %c0_22 = arith.constant 0 : index
    %c0_23 = arith.constant 0 : index
    %15 = vector.load %arg2[%c0_20, %c0_21, %c0_22, %c0_23] : memref<1x3x16x16xf32, #tpu.memory_space<vmem>>, vector<1x3x16x16xf32>
    %16 = vector.shape_cast %15 : vector<1x3x16x16xf32> to vector<3x16x16xf32>
    %17 = vector.shape_cast %14 : vector<3x16x16xf32> to vector<1x3x16x16xf32>
    tpu.vector_store %arg2[%c0_20, %c0_21, %c0_22, %c0_23], %17 {strides = array<i32>} : memref<1x3x16x16xf32, #tpu.memory_space<vmem>>, vector<1x3x16x16xf32>,
    return
  }
  func.func @transform_0(%arg0: i32) -> (i32, i32, i32, i32) {
    %c0_i32 = arith.constant 0 : i32
    %c0_i32_0 = arith.constant 0 : i32
    %c0_i32_1 = arith.constant 0 : i32
    %c0_i32_2 = arith.constant 0 : i32
    return %arg0, %c0_i32, %c0_i32_0, %c0_i32_1 : i32, i32, i32, i32
  }
  func.func @transform_1(%arg0: i32) -> (i32, i32, i32, i32) {
    %c0_i32 = arith.constant 0 : i32
    %c0_i32_0 = arith.constant 0 : i32
    %c0_i32_1 = arith.constant 0 : i32
    %c0_i32_2 = arith.constant 0 : i32
    return %arg0, %c0_i32, %c0_i32_0, %c0_i32_1 : i32, i32, i32, i32
  }
}

</mosaic_0001>

<llo_original>
// kernel: tpu_custom_call.1
$region0: #{tpu_custom_call.1}
  #allocation0 [shape = 'u32[]', space=smem, size = 0x4, offset = 0x4, fixed_abs, tag = 'smem constant byte address 0x4 - core index']
  #allocation1 [shape = 'u32[144,128]{1,0:T(1,128)}', space=vmem, size = 0x12000, scoped, tag = 'internal scratch']
  #allocation2 [shape = 'f32[3,18,18]{2,1,0:T(8,128)}', space=vmem, size = 0x9000, scoped, tag = 'scratch operand']
  %s0 = inlined_call_operand.hbm [shape: f32[2,4,16,16], index: 0, kind: input, shape index: {}]
  %s1 = inlined_call_operand.hbm [shape: f32[2,3,16,16], index: 1, kind: output, shape index: {}]
  %s2 = sld [smem:[#allocation0]]
  $region41: #{tpu_custom_call.1} parent=0
    _
  %s4 = ssub.s32 1, %s2
  %s5 = scalar_select 0, %s4, %s2
  $region1: #{tpu_custom_call.1} parent=0
    #allocation3 [shape = 'u8[49152]{0}', space=vmem, size = 0xc000, scoped, tag = 'input window, operand 0']
    #allocation4 [shape = 's32[2]{0}', space=sflag, size = 0x8, scoped, tag = 'scoped memory for tpu_custom_call.1']
    #allocation5 [shape = 's32[2]{0}', space=sflag, size = 0x8, scoped, tag = 'scoped memory for tpu_custom_call.1']
    #allocation6 [shape = 'u8[49152]{0}', space=vmem, size = 0xc000, scoped, tag = 'output window, operand 0']
    %6 = vsyncpa [#allocation4], 0
    %s7 = scalar_lea.sflag [#allocation4], 1
    %8 = vsyncpa %s7, 0
    %9 = vsyncpa [#allocation5], 0
    %s10 = scalar_lea.sflag [#allocation5], 1
    %11 = vsyncpa %s10, 0
    loop: start=0, step=1, limit=4
    $region2: #{tpu_custom_call.1} parent=1 // loop_pre_header
      _
    $region3: #{tpu_custom_call.1} parent=1 // loop_header
      %s13 = sphi 0, %s17
      %p14 = scmp.ge.s32.totalorder %s13, 4
      %s23 = sphi 0, %s25
      %s26 = sphi 0, %s23
      %s27 = sphi 0, %s26
      %s43 = sphi 0, %s27
      %s49 = sphi 0, %s51
      %s52 = sphi 0, %s49
      %s53 = sphi 0, %s52
      %s69 = sphi 0, %s53
    $region4: #{tpu_custom_call.1} parent=1 // loop_header_branch
      %16 = sbr.rel (%p14) target = $region8
    $region5: #{tpu_custom_call.1} parent=1 // loop_body
      %s18 = ssub.s32 %s13, 1
      %s19 = ssub.s32 %s13, 2
      %s20 = sadd.s32 %s13, 1
      %s21 = ssub.s32 %s13, %s20
      %p22 = scmp.eq.s32.totalorder %s21, 0
      %s24 = sadd.s32 %s23, 1
      %s25 = scalar_select %p22, %s23, %s24
      %p28 = pneg %p22
      %p29 = scmp.eq.s32.totalorder %s13, 1
      %p30 = por %p28, %p29
      %p31 = scmp.ne.s32.totalorder %s23, %s26
      %p32 = scmp.eq.s32.totalorder %s13, 0
      %p33 = por %p31, %p32
      %p34 = scmp.ne.s32.totalorder %s23, %s26
      %p35 = scmp.eq.s32.totalorder %s18, 1
      %p36 = por %p34, %p35
      %p37 = scmp.ne.s32.totalorder %s26, %s27
      %p38 = scmp.eq.s32.totalorder %s18, 0
      %p39 = por %p37, %p38
      %p40 = scmp.ne.s32.totalorder %s26, %s27
      %p41 = scmp.eq.s32.totalorder %s19, 1
      %p42 = por %p40, %p41
      %p44 = scmp.ne.s32.totalorder %s27, %s43
      %p45 = scmp.eq.s32.totalorder %s19, 0
      %p46 = por %p44, %p45
      %s47 = ssub.s32 %s13, %s20
      %p48 = scmp.eq.s32.totalorder %s47, 0
      %s50 = sadd.s32 %s49, 1
      %s51 = scalar_select %p48, %s49, %s50
      %p54 = pneg %p48
      %p55 = scmp.eq.s32.totalorder %s13, 1
      %p56 = por %p54, %p55
      %p57 = scmp.ne.s32.totalorder %s49, %s52
      %p58 = scmp.eq.s32.totalorder %s13, 0
      %p59 = por %p57, %p58
      %p60 = scmp.ne.s32.totalorder %s49, %s52
      %p61 = scmp.eq.s32.totalorder %s18, 1
      %p62 = por %p60, %p61
      %p63 = scmp.ne.s32.totalorder %s52, %s53
      %p64 = scmp.eq.s32.totalorder %s18, 0
      %p65 = por %p63, %p64
      %p66 = scmp.ne.s32.totalorder %s52, %s53
      %p67 = scmp.eq.s32.totalorder %s19, 1
      %p68 = por %p66, %p67
      %p70 = scmp.ne.s32.totalorder %s53, %s69
      %p71 = scmp.eq.s32.totalorder %s19, 0
      %p72 = por %p70, %p71
      %p73 = scmp.le.s32.totalorder 1, %s13
      %p74 = scmp.lt.s32.totalorder %s13, 3
      %p75 = pnand %p73, %p74
      %p76 = pneg %p75
      // Predicated region
      $region9: #{tpu_custom_call.1} parent=5 // pred_check
        _
      $region10: #{tpu_custom_call.1} parent=5 // pred_check_branch
        %78 = sbr.rel (%p75) target = $region12
      $region11: #{tpu_custom_call.1} parent=5 // pred_region
        %s79 = ssub.s32 %s13, 1
      $region12: #{tpu_custom_call.1} parent=5 // pred_fallthru
        _
      %p80 = scmp.lt.s32.totalorder %s13, 2
      // Predicated region
      $region13: #{tpu_custom_call.1} parent=5 // pred_check
        %p81 = pneg %p80
      $region14: #{tpu_custom_call.1} parent=5 // pred_check_branch
        %83 = sbr.rel (%p81) target = $region16
      $region15: #{tpu_custom_call.1} parent=5 // pred_region
        // Predicated region
        $region17: #{tpu_custom_call.1} parent=15 // pred_check
          %p84 = pneg %p33
        $region18: #{tpu_custom_call.1} parent=15 // pred_check_branch
          %86 = sbr.rel (%p84) target = $region20
        $region19: #{tpu_custom_call.1} parent=15 // pred_region
          %s87 = sand.u32 %s23, 1
          %s88 = scalar_lea.sflag [#allocation4], %s87
          %s89 = sand.u32 %s23, 1
          %s90 = smul.addr %s89, 48
          %s91 = scalar_lea.vmem [#allocation3], %s90
          %s93 = ssub.s32 768, 768
          %94 = vsyncadd %s88, %s93
          %s95 = smul.addr %s13, 8
          %s96 = smul.addr %s95, 128
          %s97 = scalar_lea.hbm %s0, %s96
          %s98 = sshll.u32 %s91, 4
          %s99 = int_to_ptr.vmem [resolvable:$true] %s98
          %104 = dma.hbm_to_vmem [thread:$0]  %s97, 768, %s99, %s88, 128, 128, 8
        $region20: #{tpu_custom_call.1} parent=15 // pred_fallthru
          _
      $region16: #{tpu_custom_call.1} parent=5 // pred_fallthru
        _
      %p105 = scmp.le.s32.totalorder 1, %s13
      %p106 = scmp.lt.s32.totalorder %s13, 3
      %p107 = pnand %p105, %p106
      %p108 = pneg %p107
      // Predicated region
      $region21: #{tpu_custom_call.1} parent=5 // pred_check
        _
      $region22: #{tpu_custom_call.1} parent=5 // pred_check_branch
        %110 = sbr.rel (%p107) target = $region24
      $region23: #{tpu_custom_call.1} parent=5 // pred_region
        %s111 = ssub.s32 %s13, 1
        %s112 = sand.u32 %s26, 1
        %s113 = scalar_lea.sflag [#allocation4], %s112
        %s114 = sand.u32 %s26, 1
        %s115 = smul.addr %s114, 48
        %s116 = scalar_lea.vmem [#allocation3], %s115
        // Predicated region
        $region25: #{tpu_custom_call.1} parent=23 // pred_check
          %p117 = pneg %p39
        $region26: #{tpu_custom_call.1} parent=23 // pred_check_branch
          %119 = sbr.rel (%p117) target = $region28
        $region27: #{tpu_custom_call.1} parent=23 // pred_region
          %120 = dma.done %s113, 768
        $region28: #{tpu_custom_call.1} parent=23 // pred_fallthru
          _
        %s121 = sand.u32 %s26, 1
        %s122 = scalar_lea.sflag [#allocation4], %s121
        %s123 = sand.u32 %s26, 1
        %s124 = smul.addr %s123, 48
        %s125 = scalar_lea.vmem [#allocation3], %s124
        %p126 = pneg %p39
        %p127 = pneg %p36
        %p128 = pneg %p65
        %p129 = pneg %p62
        %s130 = sand.u32 %s52, 1
        %s131 = scalar_lea.sflag [#allocation5], %s130
        %s132 = sand.u32 %s52, 1
        %s133 = smul.addr %s132, 48
        %s134 = scalar_lea.vmem [#allocation6], %s133
        %vm135 = vcmask 146432
        %136 = vst.msk [vmem:[#allocation2] sm:$0xff] %vm135, 0.0
        %137 = vst.msk [vmem:[#allocation2 + $0x8] sm:$0xff] %vm135, 0.0
        %vm138 = vcmask 140288
        %139 = vst.msk [vmem:[#allocation2 + $0x10] sm:$0x3] %vm138, 0.0
        %140 = vst.msk [vmem:[#allocation2 + $0x18] sm:$0xff] %vm135, 0.0
        %141 = vst.msk [vmem:[#allocation2 + $0x20] sm:$0xff] %vm135, 0.0
        %142 = vst.msk [vmem:[#allocation2 + $0x28] sm:$0x3] %vm138, 0.0
        %143 = vst.msk [vmem:[#allocation2 + $0x30] sm:$0xff] %vm135, 0.0
        %144 = vst.msk [vmem:[#allocation2 + $0x38] sm:$0xff] %vm135, 0.0
        %145 = vst.msk [vmem:[#allocation2 + $0x40] sm:$0x3] %vm138, 0.0
        %v146 = vld [vmem:[%s116] sm:$0xff]
        %v147 = vld [vmem:[%s116 + $0x8] sm:$0xff]
        %v148 = vld [vmem:[%s116 + $0x10] sm:$0xff]
        %v149 = vld [vmem:[%s116 + $0x18] sm:$0xff]
        %v150 = vld [vmem:[%s116 + $0x20] sm:$0xff]
        %v151 = vld [vmem:[%s116 + $0x28] sm:$0xff]
        %158 = vrot.lane.b32.xlu0 %v146, 1
        %v159 = vpop.permute.xlu0 %158
        %160 = vrot.lane.b32.xlu0 %v147, 1
        %v161 = vpop.permute.xlu0 %160
        %162 = vrot.lane.b32.xlu0 %v148, 1
        %v163 = vpop.permute.xlu0 %162
        %164 = vrot.lane.b32.xlu0 %v149, 1
        %v165 = vpop.permute.xlu0 %164
        %166 = vrot.lane.b32.xlu0 %v150, 1
        %v167 = vpop.permute.xlu0 %166
        %168 = vrot.lane.b32.xlu0 %v151, 1
        %v169 = vpop.permute.xlu0 %168
        %vm176 = vcmask 138248
        %177 = vst.msk [vmem:[#allocation2 + $0x1] sm:$0xff] %vm176, %v159
        %178 = vst.msk [vmem:[#allocation2 + $0x9] sm:$0xff] %vm176, %v161
        %179 = vst.msk [vmem:[#allocation2 + $0x19] sm:$0xff] %vm176, %v163
        %180 = vst.msk [vmem:[#allocation2 + $0x21] sm:$0xff] %vm176, %v165
        %181 = vst.msk [vmem:[#allocation2 + $0x31] sm:$0xff] %vm176, %v167
        %182 = vst.msk [vmem:[#allocation2 + $0x39] sm:$0xff] %vm176, %v169
        %v183 = vld [vmem:[#allocation2] sm:$0xff]
        %v184 = vld [vmem:[#allocation2 + $0x8] sm:$0xff]
        %v185 = vld [vmem:[#allocation2 + $0x18] sm:$0xff]
        %v186 = vld [vmem:[#allocation2 + $0x20] sm:$0xff]
        %v187 = vld [vmem:[#allocation2 + $0x30] sm:$0xff]
        %v188 = vld [vmem:[#allocation2 + $0x38] sm:$0xff]
        %v189 = vld [vmem:[#allocation2 + $0x2] sm:$0xff]
        %v190 = vld [vmem:[#allocation2 + $0xa] sm:$0xff]
        %v191 = vld [vmem:[#allocation2 + $0x1a] sm:$0xff]
        %v192 = vld [vmem:[#allocation2 + $0x22] sm:$0xff]
        %v193 = vld [vmem:[#allocation2 + $0x32] sm:$0xff]
        %v194 = vld [vmem:[#allocation2 + $0x3a] sm:$0xff]
        %v195 = vld [vmem:[#allocation2 + $0x1] sm:$0xff]
        %v196 = vld [vmem:[#allocation2 + $0x9] sm:$0xff]
        %v197 = vld [vmem:[#allocation2 + $0x19] sm:$0xff]
        %v198 = vld [vmem:[#allocation2 + $0x21] sm:$0xff]
        %v199 = vld [vmem:[#allocation2 + $0x31] sm:$0xff]
        %v200 = vld [vmem:[#allocation2 + $0x39] sm:$0xff]
        %v201 = vmul.f32 %v146, 4.9
        %v202 = vmul.f32 %v147, 4.9
        %v203 = vmul.f32 %v148, 4.9
        %v204 = vmul.f32 %v149, 4.9
        %v205 = vmul.f32 %v150, 4.9
        %v206 = vmul.f32 %v151, 4.9
        %v207 = vadd.f32 %v183, %v189
        %v208 = vadd.f32 %v184, %v190
        %v209 = vadd.f32 %v185, %v191
        %v210 = vadd.f32 %v186, %v192
        %v211 = vadd.f32 %v187, %v193
        %v212 = vadd.f32 %v188, %v194
        %219 = vrot.lane.b32.xlu0 %v207, 127
        %v220 = vpop.permute.xlu0 %219
        %221 = vrot.lane.b32.xlu0 %v208, 127
        %v222 = vpop.permute.xlu0 %221
        %223 = vrot.lane.b32.xlu0 %v209, 127
        %v224 = vpop.permute.xlu0 %223
        %225 = vrot.lane.b32.xlu0 %v210, 127
        %v226 = vpop.permute.xlu0 %225
        %227 = vrot.lane.b32.xlu0 %v211, 127
        %v228 = vpop.permute.xlu0 %227
        %229 = vrot.lane.b32.xlu0 %v212, 127
        %v230 = vpop.permute.xlu0 %229
        %v237 = vsub.f32 %v201, %v220
        %v238 = vsub.f32 %v202, %v222
        %v239 = vsub.f32 %v203, %v224
        %v240 = vsub.f32 %v204, %v226
        %v241 = vsub.f32 %v205, %v228
        %v242 = vsub.f32 %v206, %v230
        %249 = vrot.lane.b32.xlu0 %v195, 126
        %v250 = vpop.permute.xlu0 %249
        %251 = vrot.lane.b32.xlu0 %v196, 126
        %v252 = vpop.permute.xlu0 %251
        %253 = vrot.lane.b32.xlu0 %v197, 126
        %v254 = vpop.permute.xlu0 %253
        %255 = vrot.lane.b32.xlu0 %v198, 126
        %v256 = vpop.permute.xlu0 %255
        %257 = vrot.lane.b32.xlu0 %v199, 126
        %v258 = vpop.permute.xlu0 %257
        %259 = vrot.lane.b32.xlu0 %v200, 126
        %v260 = vpop.permute.xlu0 %259
        %v267 = vadd.f32 %v195, %v250
        %v268 = vadd.f32 %v196, %v252
        %v269 = vadd.f32 %v197, %v254
        %v270 = vadd.f32 %v198, %v256
        %v271 = vadd.f32 %v199, %v258
        %v272 = vadd.f32 %v200, %v260
        %v273 = vsub.f32 %v237, %v267
        %v274 = vsub.f32 %v238, %v268
        %v275 = vsub.f32 %v239, %v269
        %v276 = vsub.f32 %v240, %v270
        %v277 = vsub.f32 %v241, %v271
        %v278 = vsub.f32 %v242, %v272
        %vm279 = vcmask 130048
        %280 = vst.msk [vmem:[%s134] sm:$0xff] %vm279, %v273
        %281 = vst.msk [vmem:[%s134 + $0x8] sm:$0xff] %vm279, %v274
        %282 = vst.msk [vmem:[%s134 + $0x10] sm:$0xff] %vm279, %v275
        %283 = vst.msk [vmem:[%s134 + $0x18] sm:$0xff] %vm279, %v276
        %284 = vst.msk [vmem:[%s134 + $0x20] sm:$0xff] %vm279, %v277
        %285 = vst.msk [vmem:[%s134 + $0x28] sm:$0xff] %vm279, %v278
        %s286 = sand.u32 %s52, 1
        %s287 = scalar_lea.sflag [#allocation5], %s286
        %s288 = sand.u32 %s52, 1
        %s289 = smul.addr %s288, 48
        %s290 = scalar_lea.vmem [#allocation6], %s289
        // Predicated region
        $region29: #{tpu_custom_call.1} parent=23 // pred_check
          %p291 = pneg %p62
        $region30: #{tpu_custom_call.1} parent=23 // pred_check_branch
          %293 = sbr.rel (%p291) target = $region32
        $region31: #{tpu_custom_call.1} parent=23 // pred_region
          %s295 = ssub.s32 768, 768
          %296 = vsyncadd %s287, %s295
          %s297 = smul.addr %s18, 6
          %s298 = smul.addr %s297, 128
          %s299 = scalar_lea.hbm %s1, %s298
          %s300 = sshll.u32 %s290, 4
          %s301 = int_to_ptr.vmem [resolvable:$true] %s300
          %306 = dma.vmem_to_hbm [thread:$0]  %s301, 768, %s299, %s287, 128, 128, 8
        $region32: #{tpu_custom_call.1} parent=23 // pred_fallthru
          _
      $region24: #{tpu_custom_call.1} parent=5 // pred_fallthru
        _
      %p307 = scmp.le.s32.totalorder 2, %s13
      // Predicated region
      $region33: #{tpu_custom_call.1} parent=5 // pred_check
        %p308 = pneg %p307
      $region34: #{tpu_custom_call.1} parent=5 // pred_check_branch
        %310 = sbr.rel (%p308) target = $region36
      $region35: #{tpu_custom_call.1} parent=5 // pred_region
        %s311 = ssub.s32 %s13, 2
        // Predicated region
        $region37: #{tpu_custom_call.1} parent=35 // pred_check
          %p312 = pneg %p68
        $region38: #{tpu_custom_call.1} parent=35 // pred_check_branch
          %314 = sbr.rel (%p312) target = $region40
        $region39: #{tpu_custom_call.1} parent=35 // pred_region
          %s315 = sand.u32 %s53, 1
          %s316 = scalar_lea.sflag [#allocation5], %s315
          %s317 = sand.u32 %s53, 1
          %s318 = smul.addr %s317, 48
          %s319 = scalar_lea.vmem [#allocation6], %s318
          %320 = dma.done %s316, 768
        $region40: #{tpu_custom_call.1} parent=35 // pred_fallthru
          _
      $region36: #{tpu_custom_call.1} parent=5 // pred_fallthru
        _
    $region6: #{tpu_custom_call.1} parent=1 // loop_footer
      %s17 = sadd.s32 1, %s13
    $region7: #{tpu_custom_call.1} parent=1 // loop_footer_branch
      %12 = sbr.rel target = $region3
    $region8: #{tpu_custom_call.1} parent=1 // loop_exit
      _
    %321 = vsyncpa [#allocation4], 1
    %s322 = scalar_lea.sflag [#allocation4], 1
    %323 = vsyncpa %s322, 1
    %324 = vsyncpa [#allocation5], 1
    %s325 = scalar_lea.sflag [#allocation5], 1
    %326 = vsyncpa %s325, 1

</llo_original>
